<compile_context>
chip_gen: v7x
topology: tpu7x:2x2x1
jax: 0.10.0
libtpu: 0.0.40
codegen_flags: <defaults>
</compile_context>

<pallas_src>
import functools

import jax
import jax.numpy as jnp
from jax.experimental import pallas as pl
from jax.experimental.pallas import tpu as pltpu

_SUBLANE = 8
_MIB = 1 << 20


def _round_up(x: int, m: int) -> int:
    return (x + m - 1) // m * m


def _tpu_generation() -> str:
    try:
        kind = jax.devices()[0].device_kind.lower()
    except Exception:
        return "unknown"
    if "v5" in kind:
        return "v5e"
    if "v6" in kind:
        return "v6e"
    if "7" in kind:
        return "v7x"
    return "unknown"


def _gen_config(gen: str):
    # pad_big: K/N padding multiple used when a dim is >= 256 (fills 256-wide MXU).
    if gen == "v5e":
        return dict(pad_big=128, block_m=256, vmem_cap=100 * _MIB)
    if gen == "v6e":
        return dict(pad_big=256, block_m=512, vmem_cap=100 * _MIB)
    if gen == "v7x":
        return dict(pad_big=256, block_m=256, vmem_cap=48 * _MIB)
    return dict(pad_big=128, block_m=256, vmem_cap=48 * _MIB)  # conservative


def _pad_dim(d: int, cfg) -> int:
    mult = cfg["pad_big"] if d >= 256 else 128
    return _round_up(d, mult)


def _apply_act(h, act_type):
    """Activation on an f32 tile (VPU/EUP)."""
    if act_type is None:
        return h
    if act_type == "sigmoid":
        return jax.nn.sigmoid(h)
    if act_type == "relu":
        return jnp.maximum(h, 0.0)
    if act_type == "leakyrelu":
        return jnp.where(h >= 0.0, h, 0.01 * h)
    raise ValueError(f"unsupported act_type: {act_type}")


# ---------------------------------------------------------------------------
# Fused path: whole MLP in a single pallas_call (weights resident in VMEM).
# ---------------------------------------------------------------------------
def _mlp_fused_kernel(*refs, num_layers, act_type, final_act_type):
    # refs = (x_ref, w0, b0, w1, b1, ..., o_ref)
    x_ref = refs[0]
    o_ref = refs[-1]
    wb_refs = refs[1:-1]

    h = x_ref[...].astype(jnp.float32)
    for layer in range(num_layers):
        w_ref = wb_refs[2 * layer]        # (din_pad, dout_pad), pre-transposed bf16
        b_ref = wb_refs[2 * layer + 1]    # (1, dout_pad) bf16
        # bf16 x bf16 operands, f32 accumulate on the MXU.
        h = jnp.dot(h.astype(w_ref.dtype), w_ref[...],
                    preferred_element_type=jnp.float32)
        h = h + b_ref[...].astype(jnp.float32)
        act = act_type if layer < num_layers - 1 else final_act_type
        h = _apply_act(h, act)
    o_ref[...] = h.astype(o_ref.dtype)


# ---------------------------------------------------------------------------
# Fallback path: per-layer K/N-tiled linear+bias+act with f32 accumulator.
# ---------------------------------------------------------------------------
def _linear_act_kernel(x_ref, w_ref, b_ref, o_ref, acc_ref, *, act):
    k = pl.program_id(2)

    @pl.when(k == 0)
    def _():
        acc_ref[...] = jnp.zeros_like(acc_ref)

    acc_ref[...] += jnp.dot(x_ref[...].astype(w_ref.dtype), w_ref[...],
                            preferred_element_type=jnp.float32)

    @pl.when(k == pl.num_programs(2) - 1)
    def _():
        h = acc_ref[...] + b_ref[...].astype(jnp.float32)
        o_ref[...] = _apply_act(h, act).astype(o_ref.dtype)


def _pick_tile(dim: int, candidates=(1024, 512, 256, 128)) -> int:
    for c in candidates:
        if c <= dim and dim % c == 0:
            return c
    return dim


def _tiled_linear(x_p, wt, bp, *, act, out_dtype, tm, vmem_cap):
    M, K = x_p.shape
    _, N = wt.shape
    tk = _pick_tile(K)
    tn = _pick_tile(N)
    grid = (M // tm, N // tn, K // tk)

    vmem_need = (2 * (tm * tk * x_p.dtype.itemsize
                      + tk * tn * wt.dtype.itemsize
                      + tm * tn * jnp.dtype(out_dtype).itemsize
                      + tn * bp.dtype.itemsize)
                 + tm * tn * 4            # f32 accumulator scratch
                 + 4 * _MIB)
    vmem_limit = int(min(vmem_cap, max(vmem_need, 32 * _MIB)))

    return pl.pallas_call(
        functools.partial(_linear_act_kernel, act=act),
        out_shape=jax.ShapeDtypeStruct((M, N), out_dtype),
        grid=grid,
        in_specs=[
            pl.BlockSpec((tm, tk), lambda i, j, k: (i, k)),
            pl.BlockSpec((tk, tn), lambda i, j, k: (k, j)),
            pl.BlockSpec((1, tn), lambda i, j, k: (0, j)),
        ],
        out_specs=pl.BlockSpec((tm, tn), lambda i, j, k: (i, j)),
        scratch_shapes=[pltpu.VMEM((tm, tn), jnp.float32)],
        compiler_params=pltpu.CompilerParams(
            dimension_semantics=("parallel", "parallel", "arbitrary"),
            vmem_limit_bytes=vmem_limit,
        ),
        cost_estimate=pl.CostEstimate(
            flops=2 * M * K * N,
            transcendentals=(M * N if act == "sigmoid" else 0),
            bytes_accessed=(M * K * x_p.dtype.itemsize
                            + K * N * wt.dtype.itemsize
                            + N * bp.dtype.itemsize
                            + M * N * jnp.dtype(out_dtype).itemsize),
        ),
    )(x_p, wt, bp)


# ---------------------------------------------------------------------------
# Parameter init (torch nn.Linear semantics) -> padded, pre-transposed, bf16.
# ---------------------------------------------------------------------------
def init_mlp_params(key, dims, dtype=jnp.bfloat16):
    """nn.Linear-style init: uniform(-1/sqrt(in), 1/sqrt(in)) for W and b.

    Weights are stored PRE-TRANSPOSED and zero-padded to (din_pad, dout_pad)
    (lane-dense, generation-aware multiple), in bf16 by default so the MXU
    runs bf16-native and weight HBM/VMEM bytes are halved.
    """
    for d in dims:
        if d is None:
            raise Exception("None in {} is not allowed.".format(dims))
    cfg = _gen_config(_tpu_generation())
    params = []
    for i in range(len(dims) - 1):
        din, dout = dims[i], dims[i + 1]
        key, kw, kb = jax.random.split(key, 3)
        bound = 1.0 / (din ** 0.5)
        w = jax.random.uniform(kw, (dout, din), jnp.float32, -bound, bound)  # torch layout
        b = jax.random.uniform(kb, (dout,), jnp.float32, -bound, bound)
        din_p, dout_p = _pad_dim(din, cfg), _pad_dim(dout, cfg)
        wt = jnp.zeros((din_p, dout_p), dtype).at[:din, :dout].set(w.T.astype(dtype))
        bp = jnp.zeros((1, dout_p), dtype).at[0, :dout].set(b.astype(dtype))
        params.append((wt, bp))
    return params


# ---------------------------------------------------------------------------
# Forward
# ---------------------------------------------------------------------------
def mlp_forward(x, params, dims, *, act_type="sigmoid", final_act_type=None,
                block_m=None, force_tiled=False):
    """y = MLP(x). x: (batch, dims[0])."""
    batch, in_features = x.shape
    assert in_features == dims[0]
    num_layers = len(dims) - 1
    assert len(params) == num_layers

    cfg = _gen_config(_tpu_generation())
    if block_m is None:
        block_m = cfg["block_m"]

    d0_p = params[0][0].shape[0]
    dL_p = params[-1][0].shape[1]

    # Batch tile: multiple of the sublane width, capped at block_m.
    tm = min(block_m, _round_up(batch, _SUBLANE))
    batch_p = _round_up(batch, tm)

    # Only materialize a padded copy of x when actually needed.
    if batch_p == batch and d0_p == in_features:
        x_p = x
    else:
        x_p = jnp.zeros((batch_p, d0_p), x.dtype).at[:batch, :in_features].set(x)

    out_dtype = x.dtype

    # Resident-VMEM footprint of the fused path (weights single-buffered).
    weight_bytes = sum(wt.size * wt.dtype.itemsize + bp.size * bp.dtype.itemsize
                       for wt, bp in params)
    max_dim_p = max([d0_p] + [wt.shape[1] for wt, _ in params])
    io_bytes = 2 * tm * d0_p * x.dtype.itemsize + 2 * tm * dL_p * jnp.dtype(out_dtype).itemsize
    scratch_bytes = 2 * tm * max_dim_p * 4   # headroom for the f32 running activation
    fused_need = weight_bytes + io_bytes + scratch_bytes + 4 * _MIB

    if force_tiled or fused_need > 0.9 * cfg["vmem_cap"]:
        # K/N-tiled per-layer path: weights too big to stay fully resident.
        h = x_p
        for i, (wt, bp) in enumerate(params):
            act = act_type if i < num_layers - 1 else final_act_type
            layer_out_dtype = out_dtype if i == num_layers - 1 else jnp.bfloat16
            h = _tiled_linear(h, wt, bp, act=act, out_dtype=layer_out_dtype,
                              tm=tm, vmem_cap=cfg["vmem_cap"])
        return h[:batch, :dims[-1]]

    # ----- fused single-pallas_call path -----
    flat_wb = []
    for wt, bp in params:
        flat_wb.extend([wt, bp])

    flops = 2 * batch_p * sum(wt.shape[0] * wt.shape[1] for wt, _ in params)
    transcendentals = 0
    if act_type == "sigmoid":
        transcendentals += batch_p * sum(wt.shape[1] for wt, _ in params[:-1])
    if final_act_type == "sigmoid":
        transcendentals += batch_p * dL_p
    bytes_accessed = (batch_p * d0_p * x.dtype.itemsize + weight_bytes
                      + batch_p * dL_p * jnp.dtype(out_dtype).itemsize)

    kernel = functools.partial(
        _mlp_fused_kernel,
        num_layers=num_layers,
        act_type=act_type,
        final_act_type=final_act_type,
    )

    def build(single_buffer_weights):
        in_specs = [pl.BlockSpec((tm, d0_p), lambda i: (i, 0))]
        for wt, bp in params:
            if single_buffer_weights:
                # Constant index_map -> no benefit from double-buffering; halve
                # the resident-weight footprint (matters most on v7x's 64 MiB).
                in_specs.append(pl.BlockSpec(wt.shape, lambda i: (0, 0),
                                             pipeline_mode=pl.Buffered(1)))
                in_specs.append(pl.BlockSpec(bp.shape, lambda i: (0, 0),
                                             pipeline_mode=pl.Buffered(1)))
            else:
                in_specs.append(pl.BlockSpec(wt.shape, lambda i: (0, 0)))
                in_specs.append(pl.BlockSpec(bp.shape, lambda i: (0, 0)))
        out_specs = pl.BlockSpec((tm, dL_p), lambda i: (i, 0))

        wbuf = 1 if single_buffer_weights else 2
        vmem_limit = int(min(cfg["vmem_cap"],
                             max(weight_bytes * wbuf + io_bytes + scratch_bytes
                                 + 4 * _MIB, 32 * _MIB)))

        return pl.pallas_call(
            kernel,
            out_shape=jax.ShapeDtypeStruct((batch_p, dL_p), out_dtype),
            grid=(batch_p // tm,),
            in_specs=in_specs,
            out_specs=out_specs,
            compiler_params=pltpu.CompilerParams(
                dimension_semantics=("parallel",),
                vmem_limit_bytes=vmem_limit,
            ),
            cost_estimate=pl.CostEstimate(
                flops=flops,
                transcendentals=transcendentals,
                bytes_accessed=bytes_accessed,
            ),
        )

    try:
        out_p = build(single_buffer_weights=True)(x_p, *flat_wb)
    except Exception:
        # Some Pallas versions reject Buffered(1); fall back to default buffering.
        out_p = build(single_buffer_weights=False)(x_p, *flat_wb)

    # Slice off batch / lane padding.
    return out_p[:batch, :dims[-1]]


def mlp_reference(x, params, dims, *, act_type="sigmoid", final_act_type=None):
    """Pure-JAX f32 reference of the same forward (unpadded sub-blocks)."""
    h = x.astype(jnp.float32)
    num_layers = len(dims) - 1
    for i, (wt, bp) in enumerate(params):
        din, dout = dims[i], dims[i + 1]
        h = h @ wt[:din, :dout].astype(jnp.float32) + bp[0, :dout].astype(jnp.float32)
        act = act_type if i < num_layers - 1 else final_act_type
        h = _apply_act(h, act)
    return h.astype(x.dtype)


if __name__ == "__main__":
    key = jax.random.PRNGKey(0)
    k_params, k_x = jax.random.split(key)

    # Small MLP consistent with the module: dims[0]=in, hidden=64, dims[-1]=out.
    dims = [32, 64, 16]
    batch = 8

    params = init_mlp_params(k_params, dims)                   # bf16, padded, pre-T
    x = jax.random.normal(k_x, (batch, dims[0]), jnp.float32)  # (8, 32)

    # bf16 matmul operands (f32 accumulate) -> compare against f32 reference
    # with a correspondingly loosened tolerance.
    TOL = 3e-2

    # Fused single-kernel path.
    y_ref = mlp_reference(x, params, dims, act_type="sigmoid", final_act_type=None)
    y = mlp_forward(x, params, dims, act_type="sigmoid", final_act_type=None)
    jax.block_until_ready(y)
    assert y.shape == (batch, dims[-1])
    assert jnp.allclose(y, y_ref, atol=TOL, rtol=TOL), (
        float(jnp.max(jnp.abs(y - y_ref))))

    # K/N-tiled accumulator path (auto-selected for large weights; forced here).
    y_t = mlp_forward(x, params, dims, act_type="sigmoid", final_act_type=None,
                      force_tiled=True)
    jax.block_until_ready(y_t)
    assert jnp.allclose(y_t, y_ref, atol=TOL, rtol=TOL), (
        float(jnp.max(jnp.abs(y_t - y_ref))))

    # Exercise relu + final sigmoid branches through the fused path.
    y2_ref = mlp_reference(x, params, dims, act_type="relu", final_act_type="sigmoid")
    y2 = mlp_forward(x, params, dims, act_type="relu", final_act_type="sigmoid")
    jax.block_until_ready(y2)
    assert jnp.allclose(y2, y2_ref, atol=TOL, rtol=TOL), (
        float(jnp.max(jnp.abs(y2 - y2_ref))))

    print("KERNEL_OK")
</pallas_src>

<mosaic_0001>
module attributes {stable_mosaic.version = 11 : i64} {
  func.func @_mlp_fused_kernel(%arg0: i32, %arg1: memref<8x128xf32, #tpu.memory_space<vmem>>, %arg2: memref<128x128xbf16, #tpu.memory_space<vmem>>, %arg3: memref<1x128xbf16, #tpu.memory_space<vmem>>, %arg4: memref<128x128xbf16, #tpu.memory_space<vmem>>, %arg5: memref<1x128xbf16, #tpu.memory_space<vmem>>, %arg6: memref<8x128xf32, #tpu.memory_space<vmem>>) attributes {dimension_semantics = [#tpu.dimension_semantics<parallel>], iteration_bounds = array<i64: 1>, scalar_prefetch = 0 : i64, scratch_operands = 0 : i64, tpu.core_type = #tpu.core_type<tc>, window_params = [{transform_indices = @transform_0, window_bounds = array<i64: 8, 128>}, {pipeline_mode = #tpu.pipeline_mode<synchronous>, transform_indices = @transform_1, window_bounds = array<i64: 128, 128>}, {pipeline_mode = #tpu.pipeline_mode<synchronous>, transform_indices = @transform_2, window_bounds = array<i64: 1, 128>}, {pipeline_mode = #tpu.pipeline_mode<synchronous>, transform_indices = @transform_3, window_bounds = array<i64: 128, 128>}, {pipeline_mode = #tpu.pipeline_mode<synchronous>, transform_indices = @transform_4, window_bounds = array<i64: 1, 128>}, {transform_indices = @transform_5, window_bounds = array<i64: 8, 128>}]} {
    %c0 = arith.constant 0 : index
    %c0_0 = arith.constant 0 : index
    %0 = vector.load %arg1[%c0, %c0_0] : memref<8x128xf32, #tpu.memory_space<vmem>>, vector<8x128xf32>
    %1 = arith.truncf %0 : vector<8x128xf32> to vector<8x128xbf16>
    %c0_1 = arith.constant 0 : index
    %c0_2 = arith.constant 0 : index
    %2 = vector.load %arg2[%c0_1, %c0_2] : memref<128x128xbf16, #tpu.memory_space<vmem>>, vector<128x128xbf16>
    %cst = arith.constant dense<0.000000e+00> : vector<8x128xf32>
    %3 = tpu.matmul %1, %2, %cst {dimension_numbers = #tpu.dot_dimension_numbers<[1], [0], [0], [1], [0, 0, 1, 1], [], []>} : vector<8x128xbf16>, vector<128x128xbf16>, vector<8x128xf32> -> vector<8x128xf32>
    %c0_3 = arith.constant 0 : index
    %c0_4 = arith.constant 0 : index
    %4 = vector.load %arg3[%c0_3, %c0_4] : memref<1x128xbf16, #tpu.memory_space<vmem>>, vector<1x128xbf16>
    %5 = arith.extf %4 : vector<1x128xbf16> to vector<1x128xf32>
    %6 = vector.broadcast %5 : vector<1x128xf32> to vector<8x128xf32>
    %7 = arith.addf %3, %6 : vector<8x128xf32>
    %8 = arith.negf %7 : vector<8x128xf32>
    %9 = math.exp %8 : vector<8x128xf32>
    %cst_5 = arith.constant 1.000000e+00 : f32
    %10 = vector.broadcast %cst_5 : f32 to vector<8x128xf32>
    %11 = arith.addf %10, %9 : vector<8x128xf32>
    %12 = arith.divf %10, %11 : vector<8x128xf32>
    %13 = arith.truncf %12 : vector<8x128xf32> to vector<8x128xbf16>
    %c0_6 = arith.constant 0 : index
    %c0_7 = arith.constant 0 : index
    %14 = vector.load %arg4[%c0_6, %c0_7] : memref<128x128xbf16, #tpu.memory_space<vmem>>, vector<128x128xbf16>
    %cst_8 = arith.constant dense<0.000000e+00> : vector<8x128xf32>
    %15 = tpu.matmul %13, %14, %cst_8 {dimension_numbers = #tpu.dot_dimension_numbers<[1], [0], [0], [1], [0, 0, 1, 1], [], []>} : vector<8x128xbf16>, vector<128x128xbf16>, vector<8x128xf32> -> vector<8x128xf32>
    %c0_9 = arith.constant 0 : index
    %c0_10 = arith.constant 0 : index
    %16 = vector.load %arg5[%c0_9, %c0_10] : memref<1x128xbf16, #tpu.memory_space<vmem>>, vector<1x128xbf16>
    %17 = arith.extf %16 : vector<1x128xbf16> to vector<1x128xf32>
    %18 = vector.broadcast %17 : vector<1x128xf32> to vector<8x128xf32>
    %19 = arith.addf %15, %18 : vector<8x128xf32>
    %c0_11 = arith.constant 0 : index
    %c0_12 = arith.constant 0 : index
    %20 = vector.load %arg6[%c0_11, %c0_12] : memref<8x128xf32, #tpu.memory_space<vmem>>, vector<8x128xf32>
    tpu.vector_store %arg6[%c0_11, %c0_12], %19 {strides = array<i32>} : memref<8x128xf32, #tpu.memory_space<vmem>>, vector<8x128xf32>,
    return
  }
  func.func @transform_0(%arg0: i32) -> (i32, i32) {
    %c0_i32 = arith.constant 0 : i32
    %c0_i32_0 = arith.constant 0 : i32
    return %arg0, %c0_i32 : i32, i32
  }
  func.func @transform_1(%arg0: i32) -> (i32, i32) {
    %c0_i32 = arith.constant 0 : i32
    %c0_i32_0 = arith.constant 0 : i32
    %c0_i32_1 = arith.constant 0 : i32
    return %c0_i32, %c0_i32_0 : i32, i32
  }
  func.func @transform_2(%arg0: i32) -> (i32, i32) {
    %c0_i32 = arith.constant 0 : i32
    %c0_i32_0 = arith.constant 0 : i32
    %c0_i32_1 = arith.constant 0 : i32
    return %c0_i32, %c0_i32_0 : i32, i32
  }
  func.func @transform_3(%arg0: i32) -> (i32, i32) {
    %c0_i32 = arith.constant 0 : i32
    %c0_i32_0 = arith.constant 0 : i32
    %c0_i32_1 = arith.constant 0 : i32
    return %c0_i32, %c0_i32_0 : i32, i32
  }
  func.func @transform_4(%arg0: i32) -> (i32, i32) {
    %c0_i32 = arith.constant 0 : i32
    %c0_i32_0 = arith.constant 0 : i32
    %c0_i32_1 = arith.constant 0 : i32
    return %c0_i32, %c0_i32_0 : i32, i32
  }
  func.func @transform_5(%arg0: i32) -> (i32, i32) {
    %c0_i32 = arith.constant 0 : i32
    %c0_i32_0 = arith.constant 0 : i32
    return %arg0, %c0_i32 : i32, i32
  }
}

module attributes {stable_mosaic.version = 11 : i64} {
  func.func @_mlp_fused_kernel(%arg0: i32, %arg1: memref<8x128xf32, #tpu.memory_space<vmem>>, %arg2: memref<128x128xbf16, #tpu.memory_space<vmem>>, %arg3: memref<1x128xbf16, #tpu.memory_space<vmem>>, %arg4: memref<128x128xbf16, #tpu.memory_space<vmem>>, %arg5: memref<1x128xbf16, #tpu.memory_space<vmem>>, %arg6: memref<8x128xf32, #tpu.memory_space<vmem>>) attributes {dimension_semantics = [#tpu.dimension_semantics<parallel>], iteration_bounds = array<i64: 1>, scalar_prefetch = 0 : i64, scratch_operands = 0 : i64, tpu.core_type = #tpu.core_type<tc>, window_params = [{transform_indices = @transform_0, window_bounds = array<i64: 8, 128>}, {pipeline_mode = #tpu.pipeline_mode<synchronous>, transform_indices = @transform_1, window_bounds = array<i64: 128, 128>}, {pipeline_mode = #tpu.pipeline_mode<synchronous>, transform_indices = @transform_2, window_bounds = array<i64: 1, 128>}, {pipeline_mode = #tpu.pipeline_mode<synchronous>, transform_indices = @transform_3, window_bounds = array<i64: 128, 128>}, {pipeline_mode = #tpu.pipeline_mode<synchronous>, transform_indices = @transform_4, window_bounds = array<i64: 1, 128>}, {transform_indices = @transform_5, window_bounds = array<i64: 8, 128>}]} {
    %c0 = arith.constant 0 : index
    %c0_0 = arith.constant 0 : index
    %0 = vector.load %arg1[%c0, %c0_0] : memref<8x128xf32, #tpu.memory_space<vmem>>, vector<8x128xf32>
    %1 = arith.truncf %0 : vector<8x128xf32> to vector<8x128xbf16>
    %c0_1 = arith.constant 0 : index
    %c0_2 = arith.constant 0 : index
    %2 = vector.load %arg2[%c0_1, %c0_2] : memref<128x128xbf16, #tpu.memory_space<vmem>>, vector<128x128xbf16>
    %cst = arith.constant dense<0.000000e+00> : vector<8x128xf32>
    %3 = tpu.matmul %1, %2, %cst {dimension_numbers = #tpu.dot_dimension_numbers<[1], [0], [0], [1], [0, 0, 1, 1], [], []>} : vector<8x128xbf16>, vector<128x128xbf16>, vector<8x128xf32> -> vector<8x128xf32>
    %c0_3 = arith.constant 0 : index
    %c0_4 = arith.constant 0 : index
    %4 = vector.load %arg3[%c0_3, %c0_4] : memref<1x128xbf16, #tpu.memory_space<vmem>>, vector<1x128xbf16>
    %5 = arith.extf %4 : vector<1x128xbf16> to vector<1x128xf32>
    %6 = vector.broadcast %5 : vector<1x128xf32> to vector<8x128xf32>
    %7 = arith.addf %3, %6 : vector<8x128xf32>
    %8 = arith.negf %7 : vector<8x128xf32>
    %9 = math.exp %8 : vector<8x128xf32>
    %cst_5 = arith.constant 1.000000e+00 : f32
    %10 = vector.broadcast %cst_5 : f32 to vector<8x128xf32>
    %11 = arith.addf %10, %9 : vector<8x128xf32>
    %12 = arith.divf %10, %11 : vector<8x128xf32>
    %13 = arith.truncf %12 : vector<8x128xf32> to vector<8x128xbf16>
    %c0_6 = arith.constant 0 : index
    %c0_7 = arith.constant 0 : index
    %14 = vector.load %arg4[%c0_6, %c0_7] : memref<128x128xbf16, #tpu.memory_space<vmem>>, vector<128x128xbf16>
    %cst_8 = arith.constant dense<0.000000e+00> : vector<8x128xf32>
    %15 = tpu.matmul %13, %14, %cst_8 {dimension_numbers = #tpu.dot_dimension_numbers<[1], [0], [0], [1], [0, 0, 1, 1], [], []>} : vector<8x128xbf16>, vector<128x128xbf16>, vector<8x128xf32> -> vector<8x128xf32>
    %c0_9 = arith.constant 0 : index
    %c0_10 = arith.constant 0 : index
    %16 = vector.load %arg5[%c0_9, %c0_10] : memref<1x128xbf16, #tpu.memory_space<vmem>>, vector<1x128xbf16>
    %17 = arith.extf %16 : vector<1x128xbf16> to vector<1x128xf32>
    %18 = vector.broadcast %17 : vector<1x128xf32> to vector<8x128xf32>
    %19 = arith.addf %15, %18 : vector<8x128xf32>
    %c0_11 = arith.constant 0 : index
    %c0_12 = arith.constant 0 : index
    %20 = vector.load %arg6[%c0_11, %c0_12] : memref<8x128xf32, #tpu.memory_space<vmem>>, vector<8x128xf32>
    tpu.vector_store %arg6[%c0_11, %c0_12], %19 {strides = array<i32>} : memref<8x128xf32, #tpu.memory_space<vmem>>, vector<8x128xf32>,
    return
  }
  func.func @transform_0(%arg0: i32) -> (i32, i32) {
    %c0_i32 = arith.constant 0 : i32
    %c0_i32_0 = arith.constant 0 : i32
    return %arg0, %c0_i32 : i32, i32
  }
  func.func @transform_1(%arg0: i32) -> (i32, i32) {
    %c0_i32 = arith.constant 0 : i32
    %c0_i32_0 = arith.constant 0 : i32
    %c0_i32_1 = arith.constant 0 : i32
    return %c0_i32, %c0_i32_0 : i32, i32
  }
  func.func @transform_2(%arg0: i32) -> (i32, i32) {
    %c0_i32 = arith.constant 0 : i32
    %c0_i32_0 = arith.constant 0 : i32
    %c0_i32_1 = arith.constant 0 : i32
    return %c0_i32, %c0_i32_0 : i32, i32
  }
  func.func @transform_3(%arg0: i32) -> (i32, i32) {
    %c0_i32 = arith.constant 0 : i32
    %c0_i32_0 = arith.constant 0 : i32
    %c0_i32_1 = arith.constant 0 : i32
    return %c0_i32, %c0_i32_0 : i32, i32
  }
  func.func @transform_4(%arg0: i32) -> (i32, i32) {
    %c0_i32 = arith.constant 0 : i32
    %c0_i32_0 = arith.constant 0 : i32
    %c0_i32_1 = arith.constant 0 : i32
    return %c0_i32, %c0_i32_0 : i32, i32
  }
  func.func @transform_5(%arg0: i32) -> (i32, i32) {
    %c0_i32 = arith.constant 0 : i32
    %c0_i32_0 = arith.constant 0 : i32
    return %arg0, %c0_i32 : i32, i32
  }
}

</mosaic_0001>

<llo_original>
// kernel: tpu_custom_call.1
$region0: #{tpu_custom_call.1}
  #allocation0 [shape = 'u32[]', space=smem, size = 0x4, offset = 0x4, fixed_abs, tag = 'smem constant byte address 0x4 - core index']
  #allocation1 [shape = 'u32[144,128]{1,0:T(1,128)}', space=vmem, size = 0x12000, scoped, tag = 'internal scratch']
  %s0 = inlined_call_operand.hbm [shape: f32[8,128], index: 0, kind: input, shape index: {}]
  %s1 = inlined_call_operand.hbm [shape: bf16[128,128], index: 1, kind: input, shape index: {}]
  %s2 = inlined_call_operand.vmem [shape: bf16[1,128], index: 2, kind: input, shape index: {}]
  %s3 = inlined_call_operand.hbm [shape: bf16[128,128], index: 3, kind: input, shape index: {}]
  %s4 = inlined_call_operand.vmem [shape: bf16[1,128], index: 4, kind: input, shape index: {}]
  %s5 = inlined_call_operand.hbm [shape: f32[8,128], index: 5, kind: output, shape index: {}]
  %s6 = sld [smem:[#allocation0]]
  $region42: #{tpu_custom_call.1} parent=0
    _
  %s8 = ssub.s32 1, %s6
  %s9 = scalar_select 0, %s8, %s6
  $region1: #{tpu_custom_call.1} parent=0
    #allocation2 [shape = 'u8[4096]{0}', space=vmem, size = 0x1000, scoped, tag = 'input window, operand 0, single buffered']
    #allocation3 [shape = 's32[1]{0}', space=sflag, size = 0x4, scoped, tag = 'scoped memory for tpu_custom_call.1']
    #allocation4 [shape = 's32[1]{0}', space=sflag, size = 0x4, scoped, tag = 'scoped memory for tpu_custom_call.1']
    #allocation5 [shape = 'u8[32768]{0}', space=vmem, size = 0x8000, scoped, tag = 'input window, operand 1, single buffered']
    #allocation6 [shape = 's32[1]{0}', space=sflag, size = 0x4, scoped, tag = 'scoped memory for tpu_custom_call.1']
    #allocation7 [shape = 'u8[32768]{0}', space=vmem, size = 0x8000, scoped, tag = 'input window, operand 3, single buffered']
    #allocation8 [shape = 'u8[4096]{0}', space=vmem, size = 0x1000, scoped, tag = 'output window, operand 0, single buffered']
    %10 = vsyncpa [#allocation3], 0
    %11 = vsyncpa [#allocation6], 0
    %12 = vsyncpa [#allocation4], 0
    // Predicated region
    $region2: #{tpu_custom_call.1} parent=1 // pred_check
      _
    $region3: #{tpu_custom_call.1} parent=1 // pred_check_branch
      %14 = sbr.rel (0) target = $region5
    $region4: #{tpu_custom_call.1} parent=1 // pred_region
      %s16 = ssub.s32 128, 128
      %17 = vsyncadd [#allocation3], %s16
      %s19 = sshll.u32 [#allocation2], 4
      %s20 = int_to_ptr.vmem [resolvable:$true] %s19
      %22 = dma.hbm_to_vmem [thread:$0]  %s0, 128, %s20, [#allocation3]
    $region5: #{tpu_custom_call.1} parent=1 // pred_fallthru
      _
    // Predicated region
    $region6: #{tpu_custom_call.1} parent=1 // pred_check
      _
    $region7: #{tpu_custom_call.1} parent=1 // pred_check_branch
      %24 = sbr.rel (0) target = $region9
    $region8: #{tpu_custom_call.1} parent=1 // pred_region
      %s26 = ssub.s32 1024, 1024
      %27 = vsyncadd [#allocation6], %s26
      %s28 = sshll.u32 [#allocation5], 4
      %s29 = int_to_ptr.vmem [resolvable:$true] %s28
      %34 = dma.hbm_to_vmem [thread:$0]  %s1, 1024, %s29, [#allocation6], 64, 64, 4
    $region9: #{tpu_custom_call.1} parent=1 // pred_fallthru
      _
    // Predicated region
    $region10: #{tpu_custom_call.1} parent=1 // pred_check
      _
    $region11: #{tpu_custom_call.1} parent=1 // pred_check_branch
      %36 = sbr.rel (0) target = $region13
    $region12: #{tpu_custom_call.1} parent=1 // pred_region
      _
    $region13: #{tpu_custom_call.1} parent=1 // pred_fallthru
      _
    // Predicated region
    $region14: #{tpu_custom_call.1} parent=1 // pred_check
      _
    $region15: #{tpu_custom_call.1} parent=1 // pred_check_branch
      %38 = sbr.rel (0) target = $region17
    $region16: #{tpu_custom_call.1} parent=1 // pred_region
      %s40 = ssub.s32 1024, 1024
      %41 = vsyncadd [#allocation6], %s40
      %s42 = sshll.u32 [#allocation7], 4
      %s43 = int_to_ptr.vmem [resolvable:$true] %s42
      %48 = dma.hbm_to_vmem [thread:$0]  %s3, 1024, %s43, [#allocation6], 64, 64, 4
    $region17: #{tpu_custom_call.1} parent=1 // pred_fallthru
      _
    // Predicated region
    $region18: #{tpu_custom_call.1} parent=1 // pred_check
      _
    $region19: #{tpu_custom_call.1} parent=1 // pred_check_branch
      %50 = sbr.rel (0) target = $region21
    $region20: #{tpu_custom_call.1} parent=1 // pred_region
      _
    $region21: #{tpu_custom_call.1} parent=1 // pred_fallthru
      _
    // Predicated region
    $region22: #{tpu_custom_call.1} parent=1 // pred_check
      _
    $region23: #{tpu_custom_call.1} parent=1 // pred_check_branch
      %52 = sbr.rel (0) target = $region25
    $region24: #{tpu_custom_call.1} parent=1 // pred_region
      %53 = dma.done [#allocation3], 128
    $region25: #{tpu_custom_call.1} parent=1 // pred_fallthru
      _
    // Predicated region
    $region26: #{tpu_custom_call.1} parent=1 // pred_check
      _
    $region27: #{tpu_custom_call.1} parent=1 // pred_check_branch
      %55 = sbr.rel (0) target = $region29
    $region28: #{tpu_custom_call.1} parent=1 // pred_region
      %56 = dma.done [#allocation6], 1024
    $region29: #{tpu_custom_call.1} parent=1 // pred_fallthru
      _
    // Predicated region
    $region30: #{tpu_custom_call.1} parent=1 // pred_check
      _
    $region31: #{tpu_custom_call.1} parent=1 // pred_check_branch
      %58 = sbr.rel (0) target = $region33
    $region32: #{tpu_custom_call.1} parent=1 // pred_region
      %59 = dma.done [#allocation6], 1024
    $region33: #{tpu_custom_call.1} parent=1 // pred_fallthru
      _
    %v61 = vld [vmem:[#allocation2] sm:$0xff]
    %v62 = vpack.c.bf16 %v61, %v61
    %v63 = vld [vmem:[#allocation5] sm:$0xf]
    %v64 = vld [vmem:[#allocation5 + $0x4] sm:$0xf]
    %v65 = vld [vmem:[#allocation5 + $0x8] sm:$0xf]
    %v66 = vld [vmem:[#allocation5 + $0xc] sm:$0xf]
    %v67 = vld [vmem:[#allocation5 + $0x10] sm:$0xf]
    %v68 = vld [vmem:[#allocation5 + $0x14] sm:$0xf]
    %v69 = vld [vmem:[#allocation5 + $0x18] sm:$0xf]
    %v70 = vld [vmem:[#allocation5 + $0x1c] sm:$0xf]
    %v71 = vld [vmem:[#allocation5 + $0x20] sm:$0xf]
    %v72 = vld [vmem:[#allocation5 + $0x24] sm:$0xf]
    %v73 = vld [vmem:[#allocation5 + $0x28] sm:$0xf]
    %v74 = vld [vmem:[#allocation5 + $0x2c] sm:$0xf]
    %v75 = vld [vmem:[#allocation5 + $0x30] sm:$0xf]
    %v76 = vld [vmem:[#allocation5 + $0x34] sm:$0xf]
    %v77 = vld [vmem:[#allocation5 + $0x38] sm:$0xf]
    %v78 = vld [vmem:[#allocation5 + $0x3c] sm:$0xf]
    %v79 = vld [vmem:[%s2] sm:$0x1]
    %v80 = vunpack.c.l.bf16 %v79
    %v81 = vlaneseq
    %v82 = vshrl.u32 %v81, 7
    %v83 = vsub.s32 0, %v82
    %v84 = vrot.slane %v80, %v83
    %v101 = vunpack.c.l.b16 %v63
    %v102 = vunpack.c.l.b16 %v64
    %v103 = vunpack.c.l.b16 %v65
    %v104 = vunpack.c.l.b16 %v66
    %v105 = vunpack.c.l.b16 %v67
    %v106 = vunpack.c.l.b16 %v68
    %v107 = vunpack.c.l.b16 %v69
    %v108 = vunpack.c.l.b16 %v70
    %v109 = vunpack.c.l.b16 %v71
    %v110 = vunpack.c.l.b16 %v72
    %v111 = vunpack.c.l.b16 %v73
    %v112 = vunpack.c.l.b16 %v74
    %v113 = vunpack.c.l.b16 %v75
    %v114 = vunpack.c.l.b16 %v76
    %v115 = vunpack.c.l.b16 %v77
    %v116 = vunpack.c.l.b16 %v78
    %v117 = vpack.c.b16 %v102, %v101
    %v118 = vpack.c.b16 %v104, %v103
    %v119 = vpack.c.b16 %v106, %v105
    %v120 = vpack.c.b16 %v108, %v107
    %v121 = vpack.c.b16 %v110, %v109
    %v122 = vpack.c.b16 %v112, %v111
    %v123 = vpack.c.b16 %v114, %v113
    %v124 = vpack.c.b16 %v116, %v115
    %133 = vmatprep.subr.bf16.mxu0 0
    %134 = vmatpush1.bf16.msra.mxu0 %v117
    %135 = vmatprep.subr.bf16.mxu0 0
    %136 = vmatpush1.bf16.msra.mxu0 %v118
    %137 = vmatprep.subr.bf16.mxu0 0
    %138 = vmatpush1.bf16.msra.mxu0 %v119
    %139 = vmatprep.subr.bf16.mxu0 0
    %140 = vmatpush1.bf16.msra.mxu0 %v120
    %141 = vmatprep.subr.bf16.mxu0 0
    %142 = vmatpush1.bf16.msra.mxu0 %v121
    %143 = vmatprep.subr.bf16.mxu0 0
    %144 = vmatpush1.bf16.msra.mxu0 %v122
    %145 = vmatprep.subr.bf16.mxu0 0
    %146 = vmatpush1.bf16.msra.mxu0 %v123
    %147 = vmatprep.subr.bf16.mxu0 0
    %148 = vmatpush1.bf16.msra.mxu0 %v124
    %149 = vmatprep.subr.bf16.mxu0 0
    %150 = vmatpush1.bf16.msra.mxu0 0
    %151 = vmatprep.subr.bf16.mxu0 0
    %152 = vmatpush1.bf16.msra.mxu0 0
    %153 = vmatprep.subr.bf16.mxu0 0
    %154 = vmatpush1.bf16.msra.mxu0 0
    %155 = vmatprep.subr.bf16.mxu0 0
    %156 = vmatpush1.bf16.msra.mxu0 0
    %157 = vmatprep.subr.bf16.mxu0 0
    %158 = vmatpush1.bf16.msra.mxu0 0
    %159 = vmatprep.subr.bf16.mxu0 0
    %160 = vmatpush1.bf16.msra.mxu0 0
    %161 = vmatprep.subr.bf16.mxu0 0
    %162 = vmatpush1.bf16.msra.mxu0 0
    %163 = vmatprep.subr.bf16.mxu0 0
    %164 = vmatpush1.bf16.msra.mxu0 0
    %165 = vmatprep.mubr.bf16.mxu0 0
    %166 = vmatmul.mubr.bf16.gmra.mrb[0].mxu0 %v62
    %v167 = vpop.f32.mrb[0].mxu0
    %v168 = vadd.f32 %v84, %v167
    %v169 = vpop.f32.mrb[0].mxu0
    %v170 = vpop.f32.mrb[0].mxu0
    %v171 = vpop.f32.mrb[0].mxu0
    %172 = vdwg.mxu0
    %v173 = vxor.u32 %v168, 2147483648
    %v174 = vmul.f32 %v173, 1.442695
    %v175 = vpow.pop %v174
    %v176 = vadd.f32 %v175, 1.0
    %v177 = vrcp.pop %v176
    %v178 = vmul.f32 1.0, %v177
    %v179 = vpack.c.bf16 %v178, %v178
    %v180 = vld [vmem:[#allocation7] sm:$0xf]
    %v181 = vld [vmem:[#allocation7 + $0x4] sm:$0xf]
    %v182 = vld [vmem:[#allocation7 + $0x8] sm:$0xf]
    %v183 = vld [vmem:[#allocation7 + $0xc] sm:$0xf]
    %v184 = vld [vmem:[#allocation7 + $0x10] sm:$0xf]
    %v185 = vld [vmem:[#allocation7 + $0x14] sm:$0xf]
    %v186 = vld [vmem:[#allocation7 + $0x18] sm:$0xf]
    %v187 = vld [vmem:[#allocation7 + $0x1c] sm:$0xf]
    %v188 = vld [vmem:[#allocation7 + $0x20] sm:$0xf]
    %v189 = vld [vmem:[#allocation7 + $0x24] sm:$0xf]
    %v190 = vld [vmem:[#allocation7 + $0x28] sm:$0xf]
    %v191 = vld [vmem:[#allocation7 + $0x2c] sm:$0xf]
    %v192 = vld [vmem:[#allocation7 + $0x30] sm:$0xf]
    %v193 = vld [vmem:[#allocation7 + $0x34] sm:$0xf]
    %v194 = vld [vmem:[#allocation7 + $0x38] sm:$0xf]
    %v195 = vld [vmem:[#allocation7 + $0x3c] sm:$0xf]
    %v196 = vld [vmem:[%s4] sm:$0x1]
    %v197 = vunpack.c.l.bf16 %v196
    %v198 = vlaneseq
    %v199 = vshrl.u32 %v198, 7
    %v200 = vsub.s32 0, %v199
    %v201 = vrot.slane %v197, %v200
    %v218 = vunpack.c.l.b16 %v180
    %v219 = vunpack.c.l.b16 %v181
    %v220 = vunpack.c.l.b16 %v182
    %v221 = vunpack.c.l.b16 %v183
    %v222 = vunpack.c.l.b16 %v184
    %v223 = vunpack.c.l.b16 %v185
    %v224 = vunpack.c.l.b16 %v186
    %v225 = vunpack.c.l.b16 %v187
    %v226 = vunpack.c.l.b16 %v188
    %v227 = vunpack.c.l.b16 %v189
    %v228 = vunpack.c.l.b16 %v190
    %v229 = vunpack.c.l.b16 %v191
    %v230 = vunpack.c.l.b16 %v192
    %v231 = vunpack.c.l.b16 %v193
    %v232 = vunpack.c.l.b16 %v194
    %v233 = vunpack.c.l.b16 %v195
    %v234 = vpack.c.b16 %v219, %v218
    %v235 = vpack.c.b16 %v221, %v220
    %v236 = vpack.c.b16 %v223, %v222
    %v237 = vpack.c.b16 %v225, %v224
    %v238 = vpack.c.b16 %v227, %v226
    %v239 = vpack.c.b16 %v229, %v228
    %v240 = vpack.c.b16 %v231, %v230
    %v241 = vpack.c.b16 %v233, %v232
    %250 = vmatprep.subr.bf16.mxu0 0
    %251 = vmatpush1.bf16.msra.mxu0 %v234
    %252 = vmatprep.subr.bf16.mxu0 0
    %253 = vmatpush1.bf16.msra.mxu0 %v235
    %254 = vmatprep.subr.bf16.mxu0 0
    %255 = vmatpush1.bf16.msra.mxu0 %v236
    %256 = vmatprep.subr.bf16.mxu0 0
    %257 = vmatpush1.bf16.msra.mxu0 %v237
    %258 = vmatprep.subr.bf16.mxu0 0
    %259 = vmatpush1.bf16.msra.mxu0 %v238
    %260 = vmatprep.subr.bf16.mxu0 0
    %261 = vmatpush1.bf16.msra.mxu0 %v239
    %262 = vmatprep.subr.bf16.mxu0 0
    %263 = vmatpush1.bf16.msra.mxu0 %v240
    %264 = vmatprep.subr.bf16.mxu0 0
    %265 = vmatpush1.bf16.msra.mxu0 %v241
    %266 = vmatprep.subr.bf16.mxu0 0
    %267 = vmatpush1.bf16.msra.mxu0 0
    %268 = vmatprep.subr.bf16.mxu0 0
    %269 = vmatpush1.bf16.msra.mxu0 0
    %270 = vmatprep.subr.bf16.mxu0 0
    %271 = vmatpush1.bf16.msra.mxu0 0
    %272 = vmatprep.subr.bf16.mxu0 0
    %273 = vmatpush1.bf16.msra.mxu0 0
    %274 = vmatprep.subr.bf16.mxu0 0
    %275 = vmatpush1.bf16.msra.mxu0 0
    %276 = vmatprep.subr.bf16.mxu0 0
    %277 = vmatpush1.bf16.msra.mxu0 0
    %278 = vmatprep.subr.bf16.mxu0 0
    %279 = vmatpush1.bf16.msra.mxu0 0
    %280 = vmatprep.subr.bf16.mxu0 0
    %281 = vmatpush1.bf16.msra.mxu0 0
    %282 = vmatprep.mubr.bf16.mxu0 0
    %283 = vmatmul.mubr.bf16.gmra.mrb[0].mxu0 %v179
    %v284 = vpop.f32.mrb[0].mxu0
    %v285 = vadd.f32 %v201, %v284
    %v286 = vpop.f32.mrb[0].mxu0
    %v287 = vpop.f32.mrb[0].mxu0
    %v288 = vpop.f32.mrb[0].mxu0
    %289 = vdwg.mxu0
    %290 = vst [vmem:[#allocation8] sm:$0xff] %v285
    // Predicated region
    $region34: #{tpu_custom_call.1} parent=1 // pred_check
      _
    $region35: #{tpu_custom_call.1} parent=1 // pred_check_branch
      %292 = sbr.rel (0) target = $region37
    $region36: #{tpu_custom_call.1} parent=1 // pred_region
      %s294 = ssub.s32 128, 128
      %295 = vsyncadd [#allocation4], %s294
      %s297 = sshll.u32 [#allocation8], 4
      %s298 = int_to_ptr.vmem [resolvable:$true] %s297
      %300 = dma.vmem_to_hbm [thread:$0]  %s298, 128, %s5, [#allocation4]
    $region37: #{tpu_custom_call.1} parent=1 // pred_fallthru
      _
    // Predicated region
    $region38: #{tpu_custom_call.1} parent=1 // pred_check
      _
    $region39: #{tpu_custom_call.1} parent=1 // pred_check_branch
      %302 = sbr.rel (0) target = $region41
    $region40: #{tpu_custom_call.1} parent=1 // pred_region
      %303 = dma.done [#allocation4], 128
    $region41: #{tpu_custom_call.1} parent=1 // pred_fallthru
      _
    %304 = vsyncpa [#allocation3], 1
    %305 = vsyncpa [#allocation6], 1
    %306 = vsyncpa [#allocation4], 1

// kernel: tpu_custom_call.1
$region0: #{tpu_custom_call.1}
  #allocation0 [shape = 'u32[]', space=smem, size = 0x4, offset = 0x4, fixed_abs, tag = 'smem constant byte address 0x4 - core index']
  #allocation1 [shape = 'u32[144,128]{1,0:T(1,128)}', space=vmem, size = 0x12000, scoped, tag = 'internal scratch']
  %s0 = inlined_call_operand.hbm [shape: f32[8,128], index: 0, kind: input, shape index: {}]
  %s1 = inlined_call_operand.hbm [shape: bf16[128,128], index: 1, kind: input, shape index: {}]
  %s2 = inlined_call_operand.vmem [shape: bf16[1,128], index: 2, kind: input, shape index: {}]
  %s3 = inlined_call_operand.hbm [shape: bf16[128,128], index: 3, kind: input, shape index: {}]
  %s4 = inlined_call_operand.vmem [shape: bf16[1,128], index: 4, kind: input, shape index: {}]
  %s5 = inlined_call_operand.hbm [shape: f32[8,128], index: 5, kind: output, shape index: {}]
  %s6 = sld [smem:[#allocation0]]
  $region42: #{tpu_custom_call.1} parent=0
    _
  %s8 = ssub.s32 1, %s6
  %s9 = scalar_select 0, %s8, %s6
  $region1: #{tpu_custom_call.1} parent=0
    #allocation2 [shape = 'u8[4096]{0}', space=vmem, size = 0x1000, scoped, tag = 'input window, operand 0, single buffered']
    #allocation3 [shape = 's32[1]{0}', space=sflag, size = 0x4, scoped, tag = 'scoped memory for tpu_custom_call.1']
    #allocation4 [shape = 's32[1]{0}', space=sflag, size = 0x4, scoped, tag = 'scoped memory for tpu_custom_call.1']
    #allocation5 [shape = 'u8[32768]{0}', space=vmem, size = 0x8000, scoped, tag = 'input window, operand 1, single buffered']
    #allocation6 [shape = 's32[1]{0}', space=sflag, size = 0x4, scoped, tag = 'scoped memory for tpu_custom_call.1']
    #allocation7 [shape = 'u8[32768]{0}', space=vmem, size = 0x8000, scoped, tag = 'input window, operand 3, single buffered']
    #allocation8 [shape = 'u8[4096]{0}', space=vmem, size = 0x1000, scoped, tag = 'output window, operand 0, single buffered']
    %10 = vsyncpa [#allocation3], 0
    %11 = vsyncpa [#allocation6], 0
    %12 = vsyncpa [#allocation4], 0
    // Predicated region
    $region2: #{tpu_custom_call.1} parent=1 // pred_check
      _
    $region3: #{tpu_custom_call.1} parent=1 // pred_check_branch
      %14 = sbr.rel (0) target = $region5
    $region4: #{tpu_custom_call.1} parent=1 // pred_region
      %s16 = ssub.s32 128, 128
      %17 = vsyncadd [#allocation3], %s16
      %s19 = sshll.u32 [#allocation2], 4
      %s20 = int_to_ptr.vmem [resolvable:$true] %s19
      %22 = dma.hbm_to_vmem [thread:$0]  %s0, 128, %s20, [#allocation3]
    $region5: #{tpu_custom_call.1} parent=1 // pred_fallthru
      _
    // Predicated region
    $region6: #{tpu_custom_call.1} parent=1 // pred_check
      _
    $region7: #{tpu_custom_call.1} parent=1 // pred_check_branch
      %24 = sbr.rel (0) target = $region9
    $region8: #{tpu_custom_call.1} parent=1 // pred_region
      %s26 = ssub.s32 1024, 1024
      %27 = vsyncadd [#allocation6], %s26
      %s28 = sshll.u32 [#allocation5], 4
      %s29 = int_to_ptr.vmem [resolvable:$true] %s28
      %34 = dma.hbm_to_vmem [thread:$0]  %s1, 1024, %s29, [#allocation6], 64, 64, 4
    $region9: #{tpu_custom_call.1} parent=1 // pred_fallthru
      _
    // Predicated region
    $region10: #{tpu_custom_call.1} parent=1 // pred_check
      _
    $region11: #{tpu_custom_call.1} parent=1 // pred_check_branch
      %36 = sbr.rel (0) target = $region13
    $region12: #{tpu_custom_call.1} parent=1 // pred_region
      _
    $region13: #{tpu_custom_call.1} parent=1 // pred_fallthru
      _
    // Predicated region
    $region14: #{tpu_custom_call.1} parent=1 // pred_check
      _
    $region15: #{tpu_custom_call.1} parent=1 // pred_check_branch
      %38 = sbr.rel (0) target = $region17
    $region16: #{tpu_custom_call.1} parent=1 // pred_region
      %s40 = ssub.s32 1024, 1024
      %41 = vsyncadd [#allocation6], %s40
      %s42 = sshll.u32 [#allocation7], 4
      %s43 = int_to_ptr.vmem [resolvable:$true] %s42
      %48 = dma.hbm_to_vmem [thread:$0]  %s3, 1024, %s43, [#allocation6], 64, 64, 4
    $region17: #{tpu_custom_call.1} parent=1 // pred_fallthru
      _
    // Predicated region
    $region18: #{tpu_custom_call.1} parent=1 // pred_check
      _
    $region19: #{tpu_custom_call.1} parent=1 // pred_check_branch
      %50 = sbr.rel (0) target = $region21
    $region20: #{tpu_custom_call.1} parent=1 // pred_region
      _
    $region21: #{tpu_custom_call.1} parent=1 // pred_fallthru
      _
    // Predicated region
    $region22: #{tpu_custom_call.1} parent=1 // pred_check
      _
    $region23: #{tpu_custom_call.1} parent=1 // pred_check_branch
      %52 = sbr.rel (0) target = $region25
    $region24: #{tpu_custom_call.1} parent=1 // pred_region
      %53 = dma.done [#allocation3], 128
    $region25: #{tpu_custom_call.1} parent=1 // pred_fallthru
      _
    // Predicated region
    $region26: #{tpu_custom_call.1} parent=1 // pred_check
      _
    $region27: #{tpu_custom_call.1} parent=1 // pred_check_branch
      %55 = sbr.rel (0) target = $region29
    $region28: #{tpu_custom_call.1} parent=1 // pred_region
      %56 = dma.done [#allocation6], 1024
    $region29: #{tpu_custom_call.1} parent=1 // pred_fallthru
      _
    // Predicated region
    $region30: #{tpu_custom_call.1} parent=1 // pred_check
      _
    $region31: #{tpu_custom_call.1} parent=1 // pred_check_branch
      %58 = sbr.rel (0) target = $region33
    $region32: #{tpu_custom_call.1} parent=1 // pred_region
      %59 = dma.done [#allocation6], 1024
    $region33: #{tpu_custom_call.1} parent=1 // pred_fallthru
      _
    %v61 = vld [vmem:[#allocation2] sm:$0xff]
    %v62 = vpack.c.bf16 %v61, %v61
    %v63 = vld [vmem:[#allocation5] sm:$0xf]
    %v64 = vld [vmem:[#allocation5 + $0x4] sm:$0xf]
    %v65 = vld [vmem:[#allocation5 + $0x8] sm:$0xf]
    %v66 = vld [vmem:[#allocation5 + $0xc] sm:$0xf]
    %v67 = vld [vmem:[#allocation5 + $0x10] sm:$0xf]
    %v68 = vld [vmem:[#allocation5 + $0x14] sm:$0xf]
    %v69 = vld [vmem:[#allocation5 + $0x18] sm:$0xf]
    %v70 = vld [vmem:[#allocation5 + $0x1c] sm:$0xf]
    %v71 = vld [vmem:[#allocation5 + $0x20] sm:$0xf]
    %v72 = vld [vmem:[#allocation5 + $0x24] sm:$0xf]
    %v73 = vld [vmem:[#allocation5 + $0x28] sm:$0xf]
    %v74 = vld [vmem:[#allocation5 + $0x2c] sm:$0xf]
    %v75 = vld [vmem:[#allocation5 + $0x30] sm:$0xf]
    %v76 = vld [vmem:[#allocation5 + $0x34] sm:$0xf]
    %v77 = vld [vmem:[#allocation5 + $0x38] sm:$0xf]
    %v78 = vld [vmem:[#allocation5 + $0x3c] sm:$0xf]
    %v79 = vld [vmem:[%s2] sm:$0x1]
    %v80 = vunpack.c.l.bf16 %v79
    %v81 = vlaneseq
    %v82 = vshrl.u32 %v81, 7
    %v83 = vsub.s32 0, %v82
    %v84 = vrot.slane %v80, %v83
    %v101 = vunpack.c.l.b16 %v63
    %v102 = vunpack.c.l.b16 %v64
    %v103 = vunpack.c.l.b16 %v65
    %v104 = vunpack.c.l.b16 %v66
    %v105 = vunpack.c.l.b16 %v67
    %v106 = vunpack.c.l.b16 %v68
    %v107 = vunpack.c.l.b16 %v69
    %v108 = vunpack.c.l.b16 %v70
    %v109 = vunpack.c.l.b16 %v71
    %v110 = vunpack.c.l.b16 %v72
    %v111 = vunpack.c.l.b16 %v73
    %v112 = vunpack.c.l.b16 %v74
    %v113 = vunpack.c.l.b16 %v75
    %v114 = vunpack.c.l.b16 %v76
    %v115 = vunpack.c.l.b16 %v77
    %v116 = vunpack.c.l.b16 %v78
    %v117 = vpack.c.b16 %v102, %v101
    %v118 = vpack.c.b16 %v104, %v103
    %v119 = vpack.c.b16 %v106, %v105
    %v120 = vpack.c.b16 %v108, %v107
    %v121 = vpack.c.b16 %v110, %v109
    %v122 = vpack.c.b16 %v112, %v111
    %v123 = vpack.c.b16 %v114, %v113
    %v124 = vpack.c.b16 %v116, %v115
    %133 = vmatprep.subr.bf16.mxu0 0
    %134 = vmatpush1.bf16.msra.mxu0 %v117
    %135 = vmatprep.subr.bf16.mxu0 0
    %136 = vmatpush1.bf16.msra.mxu0 %v118
    %137 = vmatprep.subr.bf16.mxu0 0
    %138 = vmatpush1.bf16.msra.mxu0 %v119
    %139 = vmatprep.subr.bf16.mxu0 0
    %140 = vmatpush1.bf16.msra.mxu0 %v120
    %141 = vmatprep.subr.bf16.mxu0 0
    %142 = vmatpush1.bf16.msra.mxu0 %v121
    %143 = vmatprep.subr.bf16.mxu0 0
    %144 = vmatpush1.bf16.msra.mxu0 %v122
    %145 = vmatprep.subr.bf16.mxu0 0
    %146 = vmatpush1.bf16.msra.mxu0 %v123
    %147 = vmatprep.subr.bf16.mxu0 0
    %148 = vmatpush1.bf16.msra.mxu0 %v124
    %149 = vmatprep.subr.bf16.mxu0 0
    %150 = vmatpush1.bf16.msra.mxu0 0
    %151 = vmatprep.subr.bf16.mxu0 0
    %152 = vmatpush1.bf16.msra.mxu0 0
    %153 = vmatprep.subr.bf16.mxu0 0
    %154 = vmatpush1.bf16.msra.mxu0 0
    %155 = vmatprep.subr.bf16.mxu0 0
    %156 = vmatpush1.bf16.msra.mxu0 0
    %157 = vmatprep.subr.bf16.mxu0 0
    %158 = vmatpush1.bf16.msra.mxu0 0
    %159 = vmatprep.subr.bf16.mxu0 0
    %160 = vmatpush1.bf16.msra.mxu0 0
    %161 = vmatprep.subr.bf16.mxu0 0
    %162 = vmatpush1.bf16.msra.mxu0 0
    %163 = vmatprep.subr.bf16.mxu0 0
    %164 = vmatpush1.bf16.msra.mxu0 0
    %165 = vmatprep.mubr.bf16.mxu0 0
    %166 = vmatmul.mubr.bf16.gmra.mrb[0].mxu0 %v62
    %v167 = vpop.f32.mrb[0].mxu0
    %v168 = vadd.f32 %v84, %v167
    %v169 = vpop.f32.mrb[0].mxu0
    %v170 = vpop.f32.mrb[0].mxu0
    %v171 = vpop.f32.mrb[0].mxu0
    %172 = vdwg.mxu0
    %v173 = vxor.u32 %v168, 2147483648
    %v174 = vmul.f32 %v173, 1.442695
    %v175 = vpow.pop %v174
    %v176 = vadd.f32 %v175, 1.0
    %v177 = vrcp.pop %v176
    %v178 = vmul.f32 1.0, %v177
    %v179 = vpack.c.bf16 %v178, %v178
    %v180 = vld [vmem:[#allocation7] sm:$0xf]
    %v181 = vld [vmem:[#allocation7 + $0x4] sm:$0xf]
    %v182 = vld [vmem:[#allocation7 + $0x8] sm:$0xf]
    %v183 = vld [vmem:[#allocation7 + $0xc] sm:$0xf]
    %v184 = vld [vmem:[#allocation7 + $0x10] sm:$0xf]
    %v185 = vld [vmem:[#allocation7 + $0x14] sm:$0xf]
    %v186 = vld [vmem:[#allocation7 + $0x18] sm:$0xf]
    %v187 = vld [vmem:[#allocation7 + $0x1c] sm:$0xf]
    %v188 = vld [vmem:[#allocation7 + $0x20] sm:$0xf]
    %v189 = vld [vmem:[#allocation7 + $0x24] sm:$0xf]
    %v190 = vld [vmem:[#allocation7 + $0x28] sm:$0xf]
    %v191 = vld [vmem:[#allocation7 + $0x2c] sm:$0xf]
    %v192 = vld [vmem:[#allocation7 + $0x30] sm:$0xf]
    %v193 = vld [vmem:[#allocation7 + $0x34] sm:$0xf]
    %v194 = vld [vmem:[#allocation7 + $0x38] sm:$0xf]
    %v195 = vld [vmem:[#allocation7 + $0x3c] sm:$0xf]
    %v196 = vld [vmem:[%s4] sm:$0x1]
    %v197 = vunpack.c.l.bf16 %v196
    %v198 = vlaneseq
    %v199 = vshrl.u32 %v198, 7
    %v200 = vsub.s32 0, %v199
    %v201 = vrot.slane %v197, %v200
    %v218 = vunpack.c.l.b16 %v180
    %v219 = vunpack.c.l.b16 %v181
    %v220 = vunpack.c.l.b16 %v182
    %v221 = vunpack.c.l.b16 %v183
    %v222 = vunpack.c.l.b16 %v184
    %v223 = vunpack.c.l.b16 %v185
    %v224 = vunpack.c.l.b16 %v186
    %v225 = vunpack.c.l.b16 %v187
    %v226 = vunpack.c.l.b16 %v188
    %v227 = vunpack.c.l.b16 %v189
    %v228 = vunpack.c.l.b16 %v190
    %v229 = vunpack.c.l.b16 %v191
    %v230 = vunpack.c.l.b16 %v192
    %v231 = vunpack.c.l.b16 %v193
    %v232 = vunpack.c.l.b16 %v194
    %v233 = vunpack.c.l.b16 %v195
    %v234 = vpack.c.b16 %v219, %v218
    %v235 = vpack.c.b16 %v221, %v220
    %v236 = vpack.c.b16 %v223, %v222
    %v237 = vpack.c.b16 %v225, %v224
    %v238 = vpack.c.b16 %v227, %v226
    %v239 = vpack.c.b16 %v229, %v228
    %v240 = vpack.c.b16 %v231, %v230
    %v241 = vpack.c.b16 %v233, %v232
    %250 = vmatprep.subr.bf16.mxu0 0
    %251 = vmatpush1.bf16.msra.mxu0 %v234
    %252 = vmatprep.subr.bf16.mxu0 0
    %253 = vmatpush1.bf16.msra.mxu0 %v235
    %254 = vmatprep.subr.bf16.mxu0 0
    %255 = vmatpush1.bf16.msra.mxu0 %v236
    %256 = vmatprep.subr.bf16.mxu0 0
    %257 = vmatpush1.bf16.msra.mxu0 %v237
    %258 = vmatprep.subr.bf16.mxu0 0
    %259 = vmatpush1.bf16.msra.mxu0 %v238
    %260 = vmatprep.subr.bf16.mxu0 0
    %261 = vmatpush1.bf16.msra.mxu0 %v239
    %262 = vmatprep.subr.bf16.mxu0 0
    %263 = vmatpush1.bf16.msra.mxu0 %v240
    %264 = vmatprep.subr.bf16.mxu0 0
    %265 = vmatpush1.bf16.msra.mxu0 %v241
    %266 = vmatprep.subr.bf16.mxu0 0
    %267 = vmatpush1.bf16.msra.mxu0 0
    %268 = vmatprep.subr.bf16.mxu0 0
    %269 = vmatpush1.bf16.msra.mxu0 0
    %270 = vmatprep.subr.bf16.mxu0 0
    %271 = vmatpush1.bf16.msra.mxu0 0
    %272 = vmatprep.subr.bf16.mxu0 0
    %273 = vmatpush1.bf16.msra.mxu0 0
    %274 = vmatprep.subr.bf16.mxu0 0
    %275 = vmatpush1.bf16.msra.mxu0 0
    %276 = vmatprep.subr.bf16.mxu0 0
    %277 = vmatpush1.bf16.msra.mxu0 0
    %278 = vmatprep.subr.bf16.mxu0 0
    %279 = vmatpush1.bf16.msra.mxu0 0
    %280 = vmatprep.subr.bf16.mxu0 0
    %281 = vmatpush1.bf16.msra.mxu0 0
    %282 = vmatprep.mubr.bf16.mxu0 0
    %283 = vmatmul.mubr.bf16.gmra.mrb[0].mxu0 %v179
    %v284 = vpop.f32.mrb[0].mxu0
    %v285 = vadd.f32 %v201, %v284
    %v286 = vpop.f32.mrb[0].mxu0
    %v287 = vpop.f32.mrb[0].mxu0
    %v288 = vpop.f32.mrb[0].mxu0
    %289 = vdwg.mxu0
    %290 = vst [vmem:[#allocation8] sm:$0xff] %v285
    // Predicated region
    $region34: #{tpu_custom_call.1} parent=1 // pred_check
      _
    $region35: #{tpu_custom_call.1} parent=1 // pred_check_branch
      %292 = sbr.rel (0) target = $region37
    $region36: #{tpu_custom_call.1} parent=1 // pred_region
      %s294 = ssub.s32 128, 128
      %295 = vsyncadd [#allocation4], %s294
      %s297 = sshll.u32 [#allocation8], 4
      %s298 = int_to_ptr.vmem [resolvable:$true] %s297
      %300 = dma.vmem_to_hbm [thread:$0]  %s298, 128, %s5, [#allocation4]
    $region37: #{tpu_custom_call.1} parent=1 // pred_fallthru
      _
    // Predicated region
    $region38: #{tpu_custom_call.1} parent=1 // pred_check
      _
    $region39: #{tpu_custom_call.1} parent=1 // pred_check_branch
      %302 = sbr.rel (0) target = $region41
    $region40: #{tpu_custom_call.1} parent=1 // pred_region
      %303 = dma.done [#allocation4], 128
    $region41: #{tpu_custom_call.1} parent=1 // pred_fallthru
      _
    %304 = vsyncpa [#allocation3], 1
    %305 = vsyncpa [#allocation6], 1
    %306 = vsyncpa [#allocation4], 1

</llo_original>
